<compile_context>
chip_gen: v6e
topology: v6e:2x2x1
jax: 0.10.0
libtpu: 0.0.40
codegen_flags: <defaults>
</compile_context>

<pallas_src>
import functools

import jax
import jax.numpy as jnp
from jax.experimental import pallas as pl
from jax.experimental.pallas import tpu as pltpu


def _round_up(x, m):
    return (x + m - 1) // m * m


def _clamped_log(x):
    # torch.nn.BCELoss clamps the log terms at -100 for numerical safety.
    return jnp.maximum(jnp.log(x), -100.0)


def custom_loss_kernel(packed_ref, out_ref, acc_ref, *,
                       n_classes, n_bbox, batch, block_rows,
                       w_obj, w_cd, w_sp, w_bb):
    pid = pl.program_id(0)

    @pl.when(pid == 0)
    def _():
        acc_ref[0] = 0.0

    # Packed lane layout:
    #   [op_p, op_y, cd_p, cd_y, bb_p(Dbb), bb_y(Dbb), sp_logits(C), sp_lbl(C)]
    o_bb_p = 4
    o_bb_y = o_bb_p + n_bbox
    o_sp_p = o_bb_y + n_bbox
    o_sp_y = o_sp_p + n_classes

    op_p = packed_ref[:, 0:1]
    op_y = packed_ref[:, 1:2]
    cd_p = packed_ref[:, 2:3]
    cd_y = packed_ref[:, 3:4]
    bb_d = packed_ref[:, o_bb_p:o_bb_y] - packed_ref[:, o_bb_y:o_sp_p]
    logits = packed_ref[:, o_sp_p:o_sp_y]
    lbl = packed_ref[:, o_sp_y:o_sp_y + n_classes]

    # --- BCE terms, per row [TB, 1] ---
    bce_obj = -(op_y * _clamped_log(op_p) + (1.0 - op_y) * _clamped_log(1.0 - op_p))
    bce_cd = -(cd_y * _clamped_log(cd_p) + (1.0 - cd_y) * _clamped_log(1.0 - cd_p))

    # --- MSE bbox, per-row sum of squared diffs [TB, 1] ---
    mse_row = jnp.sum(bb_d * bb_d, axis=1, keepdims=True)

    # --- CrossEntropy vs argmax(label, dim=1), per row [TB, 1] ---
    class_idx = jax.lax.broadcasted_iota(jnp.int32, (block_rows, n_classes), 1)
    lbl_max = jnp.max(lbl, axis=1, keepdims=True)
    # first index attaining the max (matches torch.argmax tie-breaking on CPU)
    tgt = jnp.min(jnp.where(lbl == lbl_max, class_idx, n_classes),
                  axis=1, keepdims=True)
    picked = jnp.sum(jnp.where(class_idx == tgt, logits, 0.0),
                     axis=1, keepdims=True)
    logit_max = jnp.max(logits, axis=1, keepdims=True)
    lse = logit_max + jnp.log(jnp.sum(jnp.exp(logits - logit_max),
                                      axis=1, keepdims=True))
    ce_row = lse - picked

    # --- Fused weighted combine + single masked reduction ---
    per_row = (w_obj * bce_obj + w_cd * bce_cd + w_sp * ce_row + w_bb * mse_row)
    row_idx = pid * block_rows + jax.lax.broadcasted_iota(
        jnp.int32, (block_rows, 1), 0)
    partial = jnp.sum(jnp.where(row_idx < batch, per_row, 0.0))
    acc_ref[0] = acc_ref[0] + partial

    @pl.when(pid == pl.num_programs(0) - 1)
    def _():
        out_ref[0, 0] = acc_ref[0]


def custom_loss(outputs, labels,
                weight_object_present=1.0, weight_cat_or_dog=1.0,
                weight_species_probs=1.0, weight_bbox=1.0,
                block_rows=512):
    object_present_pred, cat_or_dog_pred, species_probs_pred, bbox_pred = outputs

    B = species_probs_pred.shape[0]
    C = species_probs_pred.shape[1]
    Dbb = bbox_pred.shape[1]
    F = 4 + 2 * Dbb + 2 * C

    f32 = jnp.float32
    packed = jnp.concatenate([
        object_present_pred.reshape(B, -1).astype(f32),
        labels['object_presence'].reshape(B, -1).astype(f32),
        cat_or_dog_pred.reshape(B, -1).astype(f32),
        labels['cat_or_dog'].reshape(B, -1).astype(f32),
        bbox_pred.reshape(B, Dbb).astype(f32),
        labels['bounding_box'].reshape(B, Dbb).astype(f32),
        species_probs_pred.astype(f32),
        labels['species_probabilities'].astype(f32),
    ], axis=1)

    # Batch tile: multiple of 8 sublanes, capped at `block_rows` (<=512) so the
    # double-buffered tile is tiny compared with v7x's 64 MiB VMEM.
    TB = _round_up(min(int(block_rows), _round_up(B, 8)), 8)
    B_pad = _round_up(B, TB)
    if B_pad != B:
        packed = jnp.pad(packed, ((0, B_pad - B), (0, 0)))

    kernel = functools.partial(
        custom_loss_kernel,
        n_classes=C, n_bbox=Dbb, batch=B, block_rows=TB,
        # Fold torch's elementwise-mean divisors into the static weights.
        # NOTE: weights are baked as Python floats (same as the nn.Module ctor);
        # pass them via SMEM scalars instead if they must be traced/learned.
        w_obj=float(weight_object_present) / B,
        w_cd=float(weight_cat_or_dog) / B,
        w_sp=float(weight_species_probs) / B,
        w_bb=float(weight_bbox) / (B * Dbb),
    )

    res = pl.pallas_call(
        kernel,
        out_shape=jax.ShapeDtypeStruct((1, 1), jnp.float32),
        grid=(B_pad // TB,),
        in_specs=[pl.BlockSpec((TB, F), lambda i: (i, 0))],
        out_specs=pl.BlockSpec((1, 1), lambda i: (0, 0),
                               memory_space=pltpu.MemorySpace.SMEM),
        scratch_shapes=[pltpu.SMEM((1,), jnp.float32)],
        compiler_params=pltpu.CompilerParams(
            dimension_semantics=("arbitrary",)),
    )(packed)
    return res[0, 0]


# ----------------------------- reference & test -----------------------------

def _ref_loss(outputs, labels, w_obj, w_cd, w_sp, w_bb):
    op_p, cd_p, sp_p, bb_p = outputs

    def bce(p, y):
        return jnp.mean(-(y * jnp.maximum(jnp.log(p), -100.0)
                          + (1 - y) * jnp.maximum(jnp.log(1 - p), -100.0)))

    tgt = jnp.argmax(labels['species_probabilities'], axis=1)
    ce = jnp.mean(jax.nn.logsumexp(sp_p, axis=1)
                  - jnp.take_along_axis(sp_p, tgt[:, None], axis=1)[:, 0])
    return (w_obj * bce(op_p, labels['object_presence'])
            + w_cd * bce(cd_p, labels['cat_or_dog'])
            + w_sp * ce
            + w_bb * jnp.mean((bb_p - labels['bounding_box']) ** 2))


def _make_inputs(key, B, C):
    k1, k2, k3, k4, k5, k6, k7, k8 = jax.random.split(key, 8)
    outputs = (
        jax.nn.sigmoid(jax.random.normal(k1, (B, 1), jnp.float32)),
        jax.nn.sigmoid(jax.random.normal(k2, (B, 1), jnp.float32)),
        jax.random.normal(k3, (B, C), jnp.float32),          # logits
        jax.random.uniform(k4, (B, 4), jnp.float32),
    )
    labels = {
        'object_presence': jax.random.bernoulli(k5, 0.5, (B, 1)).astype(jnp.float32),
        'cat_or_dog': jax.random.bernoulli(k6, 0.5, (B, 1)).astype(jnp.float32),
        'species_probabilities': jax.nn.softmax(
            jax.random.normal(k7, (B, C), jnp.float32), axis=1),
        'bounding_box': jax.random.uniform(k8, (B, 4), jnp.float32),
    }
    return outputs, labels


if __name__ == "__main__":
    key = jax.random.PRNGKey(0)
    k_a, k_b = jax.random.split(key)

    # Case 1: small batch, default weights (single grid step).
    outputs, labels = _make_inputs(k_a, B=8, C=4)
    total = custom_loss(outputs, labels)
    jax.block_until_ready(total)
    ref = _ref_loss(outputs, labels, 1.0, 1.0, 1.0, 1.0)
    assert jnp.allclose(total, ref, rtol=1e-5, atol=1e-5), (total, ref)

    # Case 2: batch not a multiple of the tile, non-default weights, multiple
    # grid steps (exercises padding mask + SMEM accumulator).
    outputs2, labels2 = _make_inputs(k_b, B=37, C=5)
    total2 = custom_loss(outputs2, labels2,
                         weight_object_present=0.5, weight_cat_or_dog=2.0,
                         weight_species_probs=1.5, weight_bbox=3.0,
                         block_rows=16)
    jax.block_until_ready(total2)
    ref2 = _ref_loss(outputs2, labels2, 0.5, 2.0, 1.5, 3.0)
    assert jnp.allclose(total2, ref2, rtol=1e-5, atol=1e-5), (total2, ref2)

    print("KERNEL_OK")
</pallas_src>

<mosaic_0001>
module attributes {stable_mosaic.version = 11 : i64} {
  func.func @custom_loss_kernel(%arg0: i32, %arg1: memref<8x20xf32, #tpu.memory_space<vmem>>, %arg2: memref<1x1xf32, #tpu.memory_space<smem>>, %arg3: memref<1xf32, #tpu.memory_space<smem>>) attributes {dimension_semantics = [#tpu.dimension_semantics<arbitrary>], iteration_bounds = array<i64: 1>, scalar_prefetch = 0 : i64, scratch_operands = 1 : i64, tpu.core_type = #tpu.core_type<tc>, window_params = [{transform_indices = @transform_0, window_bounds = array<i64: 8, 20>}, {transform_indices = @transform_1, window_bounds = array<i64: 1, 1>}]} {
    %c0_i32 = arith.constant 0 : i32
    %0 = arith.cmpi eq, %arg0, %c0_i32 : i32
    %1 = arith.extui %0 : i1 to i32
    %c0_i32_0 = arith.constant 0 : i32
    %2 = arith.cmpi ne, %1, %c0_i32_0 : i32
    scf.if %2 {
      %cst_36 = arith.constant 0.000000e+00 : f32
      %c0_37 = arith.constant 0 : index
      %99 = memref.load %arg3[%c0_37] : memref<1xf32, #tpu.memory_space<smem>>
      memref.store %cst_36, %arg3[%c0_37] : memref<1xf32, #tpu.memory_space<smem>>
    } else {
    }
    %c0 = arith.constant 0 : index
    %c0_1 = arith.constant 0 : index
    %3 = vector.load %arg1[%c0, %c0_1] : memref<8x20xf32, #tpu.memory_space<vmem>>, vector<8x1xf32>
    %c0_2 = arith.constant 0 : index
    %c1 = arith.constant 1 : index
    %4 = vector.load %arg1[%c0_2, %c1] : memref<8x20xf32, #tpu.memory_space<vmem>>, vector<8x1xf32>
    %c0_3 = arith.constant 0 : index
    %c2 = arith.constant 2 : index
    %5 = vector.load %arg1[%c0_3, %c2] : memref<8x20xf32, #tpu.memory_space<vmem>>, vector<8x1xf32>
    %c0_4 = arith.constant 0 : index
    %c3 = arith.constant 3 : index
    %6 = vector.load %arg1[%c0_4, %c3] : memref<8x20xf32, #tpu.memory_space<vmem>>, vector<8x1xf32>
    %c0_5 = arith.constant 0 : index
    %c4 = arith.constant 4 : index
    %7 = vector.load %arg1[%c0_5, %c4] : memref<8x20xf32, #tpu.memory_space<vmem>>, vector<8x4xf32>
    %c0_6 = arith.constant 0 : index
    %c8 = arith.constant 8 : index
    %8 = vector.load %arg1[%c0_6, %c8] : memref<8x20xf32, #tpu.memory_space<vmem>>, vector<8x4xf32>
    %9 = arith.subf %7, %8 : vector<8x4xf32>
    %c0_7 = arith.constant 0 : index
    %c12 = arith.constant 12 : index
    %10 = vector.load %arg1[%c0_7, %c12] : memref<8x20xf32, #tpu.memory_space<vmem>>, vector<8x4xf32>
    %c0_8 = arith.constant 0 : index
    %c16 = arith.constant 16 : index
    %11 = vector.load %arg1[%c0_8, %c16] : memref<8x20xf32, #tpu.memory_space<vmem>>, vector<8x4xf32>
    %12 = math.log %3 : vector<8x1xf32>
    %cst = arith.constant -1.000000e+02 : f32
    %13 = vector.broadcast %cst : f32 to vector<8x1xf32>
    %14 = arith.maximumf %12, %13 : vector<8x1xf32>
    %15 = arith.mulf %4, %14 : vector<8x1xf32>
    %cst_9 = arith.constant 1.000000e+00 : f32
    %16 = vector.broadcast %cst_9 : f32 to vector<8x1xf32>
    %17 = arith.subf %16, %4 : vector<8x1xf32>
    %cst_10 = arith.constant 1.000000e+00 : f32
    %18 = vector.broadcast %cst_10 : f32 to vector<8x1xf32>
    %19 = arith.subf %18, %3 : vector<8x1xf32>
    %20 = math.log %19 : vector<8x1xf32>
    %cst_11 = arith.constant -1.000000e+02 : f32
    %21 = vector.broadcast %cst_11 : f32 to vector<8x1xf32>
    %22 = arith.maximumf %20, %21 : vector<8x1xf32>
    %23 = arith.mulf %17, %22 : vector<8x1xf32>
    %24 = arith.addf %15, %23 : vector<8x1xf32>
    %cst_12 = arith.constant 0.000000e+00 : f32
    %25 = vector.broadcast %cst_12 : f32 to vector<8x1xf32>
    %26 = arith.subf %25, %24 : vector<8x1xf32>
    %27 = math.log %5 : vector<8x1xf32>
    %cst_13 = arith.constant -1.000000e+02 : f32
    %28 = vector.broadcast %cst_13 : f32 to vector<8x1xf32>
    %29 = arith.maximumf %27, %28 : vector<8x1xf32>
    %30 = arith.mulf %6, %29 : vector<8x1xf32>
    %cst_14 = arith.constant 1.000000e+00 : f32
    %31 = vector.broadcast %cst_14 : f32 to vector<8x1xf32>
    %32 = arith.subf %31, %6 : vector<8x1xf32>
    %cst_15 = arith.constant 1.000000e+00 : f32
    %33 = vector.broadcast %cst_15 : f32 to vector<8x1xf32>
    %34 = arith.subf %33, %5 : vector<8x1xf32>
    %35 = math.log %34 : vector<8x1xf32>
    %cst_16 = arith.constant -1.000000e+02 : f32
    %36 = vector.broadcast %cst_16 : f32 to vector<8x1xf32>
    %37 = arith.maximumf %35, %36 : vector<8x1xf32>
    %38 = arith.mulf %32, %37 : vector<8x1xf32>
    %39 = arith.addf %30, %38 : vector<8x1xf32>
    %cst_17 = arith.constant 0.000000e+00 : f32
    %40 = vector.broadcast %cst_17 : f32 to vector<8x1xf32>
    %41 = arith.subf %40, %39 : vector<8x1xf32>
    %42 = arith.mulf %9, %9 : vector<8x4xf32>
    %cst_18 = arith.constant dense<0.000000e+00> : vector<8xf32>
    %43 = vector.multi_reduction <add>, %42, %cst_18 [1] : vector<8x4xf32> to vector<8xf32>
    %44 = vector.shape_cast %43 : vector<8xf32> to vector<8x1xf32>
    %45 = tpu.iota {dimensions = array<i32: 1>} : vector<8x4xi32>
    %cst_19 = arith.constant dense<0xFF800000> : vector<8xf32>
    %46 = vector.multi_reduction <maximumf>, %11, %cst_19 [1] : vector<8x4xf32> to vector<8xf32>
    %47 = vector.shape_cast %46 : vector<8xf32> to vector<8x1xf32>
    %48 = vector.broadcast %47 : vector<8x1xf32> to vector<8x4xf32>
    %49 = arith.cmpf oeq, %11, %48 : vector<8x4xf32>
    %c4_i32 = arith.constant 4 : i32
    %50 = vector.broadcast %c4_i32 : i32 to vector<8x4xi32>
    %51 = arith.select %49, %45, %50 : vector<8x4xi1>, vector<8x4xi32>
    %cst_20 = arith.constant dense<2147483647> : vector<8xi32>
    %52 = vector.multi_reduction <minsi>, %51, %cst_20 [1] : vector<8x4xi32> to vector<8xi32>
    %53 = vector.shape_cast %52 : vector<8xi32> to vector<8x1xi32>
    %54 = vector.broadcast %53 : vector<8x1xi32> to vector<8x4xi32>
    %55 = arith.cmpi eq, %45, %54 : vector<8x4xi32>
    %cst_21 = arith.constant 0.000000e+00 : f32
    %56 = vector.broadcast %cst_21 : f32 to vector<8x4xf32>
    %57 = arith.select %55, %10, %56 : vector<8x4xi1>, vector<8x4xf32>
    %cst_22 = arith.constant dense<0.000000e+00> : vector<8xf32>
    %58 = vector.multi_reduction <add>, %57, %cst_22 [1] : vector<8x4xf32> to vector<8xf32>
    %59 = vector.shape_cast %58 : vector<8xf32> to vector<8x1xf32>
    %cst_23 = arith.constant dense<0xFF800000> : vector<8xf32>
    %60 = vector.multi_reduction <maximumf>, %10, %cst_23 [1] : vector<8x4xf32> to vector<8xf32>
    %61 = vector.shape_cast %60 : vector<8xf32> to vector<8x1xf32>
    %62 = vector.broadcast %61 : vector<8x1xf32> to vector<8x4xf32>
    %63 = arith.subf %10, %62 : vector<8x4xf32>
    %64 = math.exp %63 : vector<8x4xf32>
    %cst_24 = arith.constant dense<0.000000e+00> : vector<8xf32>
    %65 = vector.multi_reduction <add>, %64, %cst_24 [1] : vector<8x4xf32> to vector<8xf32>
    %66 = vector.shape_cast %65 : vector<8xf32> to vector<8x1xf32>
    %67 = math.log %66 : vector<8x1xf32>
    %68 = arith.addf %61, %67 : vector<8x1xf32>
    %69 = arith.subf %68, %59 : vector<8x1xf32>
    %cst_25 = arith.constant 1.250000e-01 : f32
    %70 = vector.broadcast %cst_25 : f32 to vector<8x1xf32>
    %71 = arith.mulf %70, %26 : vector<8x1xf32>
    %cst_26 = arith.constant 1.250000e-01 : f32
    %72 = vector.broadcast %cst_26 : f32 to vector<8x1xf32>
    %73 = arith.mulf %72, %41 : vector<8x1xf32>
    %74 = arith.addf %71, %73 : vector<8x1xf32>
    %cst_27 = arith.constant 1.250000e-01 : f32
    %75 = vector.broadcast %cst_27 : f32 to vector<8x1xf32>
    %76 = arith.mulf %75, %69 : vector<8x1xf32>
    %77 = arith.addf %74, %76 : vector<8x1xf32>
    %cst_28 = arith.constant 3.125000e-02 : f32
    %78 = vector.broadcast %cst_28 : f32 to vector<8x1xf32>
    %79 = arith.mulf %78, %44 : vector<8x1xf32>
    %80 = arith.addf %77, %79 : vector<8x1xf32>
    %c8_i32 = arith.constant 8 : i32
    %81 = arith.muli %arg0, %c8_i32 : i32
    %82 = tpu.iota {dimensions = array<i32: 0>} : vector<8x1xi32>
    %83 = vector.broadcast %81 : i32 to vector<8x1xi32>
    %84 = arith.addi %83, %82 : vector<8x1xi32>
    %c8_i32_29 = arith.constant 8 : i32
    %85 = vector.broadcast %c8_i32_29 : i32 to vector<8x1xi32>
    %86 = arith.cmpi slt, %84, %85 : vector<8x1xi32>
    %cst_30 = arith.constant 0.000000e+00 : f32
    %87 = vector.broadcast %cst_30 : f32 to vector<8x1xf32>
    %88 = arith.select %86, %80, %87 : vector<8x1xi1>, vector<8x1xf32>
    %89 = vector.shape_cast %88 : vector<8x1xf32> to vector<1x8x1xf32>
    %cst_31 = arith.constant dense<0.000000e+00> : vector<1xf32>
    %90 = vector.multi_reduction <add>, %89, %cst_31 [1, 2] : vector<1x8x1xf32> to vector<1xf32>
    %91 = vector.shape_cast %90 : vector<1xf32> to vector<1x1x1xf32>
    %92 = vector.extract %91[0, 0, 0] : f32 from vector<1x1x1xf32>
    %c0_32 = arith.constant 0 : index
    %93 = memref.load %arg3[%c0_32] : memref<1xf32, #tpu.memory_space<smem>>
    %94 = arith.addf %93, %92 : f32
    %c0_33 = arith.constant 0 : index
    %95 = memref.load %arg3[%c0_33] : memref<1xf32, #tpu.memory_space<smem>>
    memref.store %94, %arg3[%c0_33] : memref<1xf32, #tpu.memory_space<smem>>
    %c0_i32_34 = arith.constant 0 : i32
    %96 = arith.cmpi eq, %arg0, %c0_i32_34 : i32
    %97 = arith.extui %96 : i1 to i32
    %c0_i32_35 = arith.constant 0 : i32
    %98 = arith.cmpi ne, %97, %c0_i32_35 : i32
    scf.if %98 {
      %c0_36 = arith.constant 0 : index
      %99 = memref.load %arg3[%c0_36] : memref<1xf32, #tpu.memory_space<smem>>
      %c0_37 = arith.constant 0 : index
      %c0_38 = arith.constant 0 : index
      %100 = memref.load %arg2[%c0_37, %c0_38] : memref<1x1xf32, #tpu.memory_space<smem>>
      memref.store %99, %arg2[%c0_37, %c0_38] : memref<1x1xf32, #tpu.memory_space<smem>>
    } else {
    }
    return
  }
  func.func @transform_0(%arg0: i32) -> (i32, i32) {
    %c0_i32 = arith.constant 0 : i32
    %c0_i32_0 = arith.constant 0 : i32
    return %arg0, %c0_i32 : i32, i32
  }
  func.func @transform_1(%arg0: i32) -> (i32, i32) {
    %c0_i32 = arith.constant 0 : i32
    %c0_i32_0 = arith.constant 0 : i32
    %c0_i32_1 = arith.constant 0 : i32
    return %c0_i32, %c0_i32_0 : i32, i32
  }
}

</mosaic_0001>

<llo_original>
// kernel: tpu_custom_call.1
$region0: #{tpu_custom_call.1}
  #allocation0 [shape = 'u32[]', space=smem, size = 0x4, offset = 0x4, fixed_abs, tag = 'smem constant byte address 0x4 - core index']
  #allocation1 [shape = 'u32[144,128]{1,0:T(1,128)}', space=vmem, size = 0x12000, scoped, tag = 'internal scratch']
  #allocation2 [shape = 'f32[1]{0:T(128)}', space=smem, size = 0x200, scoped, tag = 'scratch operand']
  %s0 = inlined_call_operand.hbm [shape: f32[8,20], index: 0, kind: input, shape index: {}]
  %s1 = inlined_call_operand.hbm [shape: f32[1,1], index: 1, kind: output, shape index: {}]
  %s2 = sld [smem:[#allocation0]]
  $region26: #{tpu_custom_call.1} parent=0
    _
  %s4 = ssub.s32 1, %s2
  %s5 = scalar_select 0, %s4, %s2
  $region1: #{tpu_custom_call.1} parent=0
    #allocation3 [shape = 'u8[4096]{0}', space=vmem, size = 0x1000, scoped, tag = 'input window, operand 0, single buffered']
    #allocation4 [shape = 's32[1]{0}', space=sflag, size = 0x4, scoped, tag = 'scoped memory for tpu_custom_call.1']
    #allocation5 [shape = 's32[1]{0}', space=sflag, size = 0x4, scoped, tag = 'scoped memory for tpu_custom_call.1']
    #allocation6 [shape = 'u8[512]{0}', space=smem, size = 0x200, scoped, tag = 'output window, operand 0, single buffered']
    %6 = vsyncpa [#allocation4], 0
    %7 = vsyncpa [#allocation5], 0
    // Predicated region
    $region2: #{tpu_custom_call.1} parent=1 // pred_check
      _
    $region3: #{tpu_custom_call.1} parent=1 // pred_check_branch
      %9 = sbr.rel (0) target = $region5
    $region4: #{tpu_custom_call.1} parent=1 // pred_region
      %s11 = ssub.s32 128, 128
      %12 = vsyncadd [#allocation4], %s11
      %s14 = sshll.u32 [#allocation3], 4
      %s15 = int_to_ptr.vmem [resolvable:$true] %s14
      %17 = dma.hbm_to_vmem [thread:$0]  %s0, 128, %s15, [#allocation4]
    $region5: #{tpu_custom_call.1} parent=1 // pred_fallthru
      _
    // Predicated region
    $region6: #{tpu_custom_call.1} parent=1 // pred_check
      _
    $region7: #{tpu_custom_call.1} parent=1 // pred_check_branch
      %19 = sbr.rel (0) target = $region9
    $region8: #{tpu_custom_call.1} parent=1 // pred_region
      %20 = dma.done [#allocation4], 128
    $region9: #{tpu_custom_call.1} parent=1 // pred_fallthru
      _
    %p21 = scmp.eq.s32.totalorder 0, 0
    // Predicated region
    $region10: #{tpu_custom_call.1} parent=1 // pred_check
      %p22 = pneg %p21
    $region11: #{tpu_custom_call.1} parent=1 // pred_check_branch
      %24 = sbr.rel (%p22) target = $region13
    $region12: #{tpu_custom_call.1} parent=1 // pred_region
      %s25 = scalar_lea.smem [#allocation2], 0
      %26 = sst [smem:[%s25]] 0.0
    $region13: #{tpu_custom_call.1} parent=1 // pred_fallthru
      _
    %v27 = vld [vmem:[#allocation3] sm:$0xff]
    %29 = vrot.lane.b32.xlu0 %v27, 124
    %v30 = vpop.permute.xlu0 %29
    %v32 = vsub.f32 %v27, %v30
    %v33 = vlog2.pop %v27
    %v34 = vmul.f32 %v33, 0.6931472
    %v35 = vmax.f32 %v34, -100.0
    %37 = vrot.lane.b32.xlu0 %v35, 1
    %v38 = vpop.permute.xlu0 %37
    %v40 = vmul.f32 %v27, %v38
    %v41 = vsub.f32 1.0, %v27
    %v42 = vlog2.pop %v41
    %v43 = vmul.f32 %v42, 0.6931472
    %v44 = vmax.f32 %v43, -100.0
    %46 = vrot.lane.b32.xlu0 %v44, 1
    %v47 = vpop.permute.xlu0 %46
    %v49 = vmul.f32 %v41, %v47
    %v50 = vadd.f32 %v40, %v49
    %v51 = vsub.f32 0.0, %v50
    %v52 = vmul.f32 %v32, %v32
    %54 = vrot.lane.b32.xlu0 %v52, 124
    %v55 = vpop.permute.xlu0 %54
    %vm57 = vcmask 31744
    %v58 = vsel %vm57, %v55, 0.0
    %59 = vadd.xlane.f32.xlu0 %v58
    %v60 = vpop.xlane.xlu0 %59
    %v61 = vlaneseq
    %v62 = vand.u32 %v61, 127
    %vm63 = vcmask 162944
    %v64 = vsel %vm63, %v27, -inf
    %65 = vmax.xlane.f32.xlu0 %v64
    %v66 = vpop.xlane.xlu0 %65
    %vm67 = vcmp.eq.f32.partialorder %v27, %v66
    %68 = vrot.lane.b32.xlu0 %v62, 16
    %v69 = vpop.permute.xlu0 %68
    %v70 = vsel %vm67, %v69, 4
    %v71 = vsel %vm63, %v70, 2147483647
    %v72 = vand.u32 %v71, 65535
    %v73 = vshra.s32 %v71, 16
    %v74 = vcvt.s32.f32 %v72
    %v75 = vcvt.s32.f32 %v73
    %76 = vmin.xlane.f32.xlu0 %v75
    %v77 = vpop.xlane.xlu0 %76
    %vm78 = vcmp.eq.f32.partialorder %v75, %v77
    %v79 = vsel %vm78, %v74, inf
    %80 = vmin.xlane.f32.xlu0 %v79
    %v81 = vpop.xlane.xlu0 %80
    %v82 = vcvt.f32.s32 %v81
    %v83 = vcvt.f32.s32 %v77
    %v84 = vshll.u32 %v83, 16
    %v85 = vadd.s32 %v84, %v82
    %vm86 = vcmp.eq.s32.totalorder %v62, %v85
    %87 = vrot.lane.b32.xlu0 %v27, 116
    %v88 = vpop.permute.xlu0 %87
    %v90 = vsel %vm86, %v88, 0.0
    %v91 = vsel %vm57, %v90, 0.0
    %92 = vadd.xlane.f32.xlu0 %v91
    %v93 = vpop.xlane.xlu0 %92
    %vm94 = vcmask 130144
    %v95 = vsel %vm94, %v27, -inf
    %96 = vmax.xlane.f32.xlu0 %v95
    %v97 = vpop.xlane.xlu0 %96
    %v98 = vsub.f32 %v27, %v97
    %v99 = vmul.f32 %v98, 1.442695
    %v100 = vpow.pop %v99
    %102 = vrot.lane.b32.xlu0 %v100, 116
    %v103 = vpop.permute.xlu0 %102
    %v105 = vsel %vm57, %v103, 0.0
    %106 = vadd.xlane.f32.xlu0 %v105
    %v107 = vpop.xlane.xlu0 %106
    %v108 = vlog2.pop %v107
    %v109 = vmul.f32 %v108, 0.6931472
    %v110 = vadd.f32 %v97, %v109
    %v111 = vsub.f32 %v110, %v93
    %v112 = vmul.f32 %v51, 0.125
    %114 = vrot.lane.b32.xlu0 %v112, 126
    %v115 = vpop.permute.xlu0 %114
    %v117 = vadd.f32 %v112, %v115
    %v118 = vmul.f32 %v111, 0.125
    %v119 = vadd.f32 %v117, %v118
    %v120 = vmul.f32 %v60, 0.03125
    %v121 = vadd.f32 %v119, %v120
    %s122 = smul.u32 0, 8
    %v123 = vlaneseq
    %v124 = vshrl.u32 %v123, 7
    %v125 = vstv %s122
    %v126 = vadd.s32 %v125, %v124
    %vm127 = vcmp.lt.s32.totalorder %v126, 8
    %v128 = vsel %vm127, %v121, 0.0
    %130 = vrot.lane.b32.xlu0 %v128, 127
    %v131 = vpop.permute.xlu0 %130
    %vm133 = vcmask 7168
    %v134 = vsel %vm133, %v131, 0.0
    %135 = vadd.xlane.f32.xlu0 %v134
    %v136 = vpop.xlane.xlu0 %135
    %v137 = vrot.slane %v136, 4
    %v138 = vadd.f32 %v136, %v137
    %v139 = vrot.slane %v138, 2
    %v140 = vadd.f32 %v138, %v139
    %v141 = vrot.slane %v140, 1
    %v142 = vadd.f32 %v140, %v141
    %s143 = vtos %v142
    %s144 = sld [smem:[#allocation2]]
    %s145 = sadd.f32 %s144, %s143
    %s146 = scalar_lea.smem [#allocation2], 0
    %147 = sst [smem:[%s146]] %s145
    // Predicated region
    $region14: #{tpu_custom_call.1} parent=1 // pred_check
      %p148 = pneg %p21
    $region15: #{tpu_custom_call.1} parent=1 // pred_check_branch
      %150 = sbr.rel (%p148) target = $region17
    $region16: #{tpu_custom_call.1} parent=1 // pred_region
      %s151 = sld [smem:[#allocation2]]
      %s152 = scalar_lea.smem [#allocation6], 0
      %153 = sst [smem:[%s152]] %s151
    $region17: #{tpu_custom_call.1} parent=1 // pred_fallthru
      _
    // Predicated region
    $region18: #{tpu_custom_call.1} parent=1 // pred_check
      _
    $region19: #{tpu_custom_call.1} parent=1 // pred_check_branch
      %155 = sbr.rel (0) target = $region21
    $region20: #{tpu_custom_call.1} parent=1 // pred_region
      %s157 = ssub.s32 16, 16
      %158 = vsyncadd [#allocation5], %s157
      %161 = dma.smem_to_hbm [#allocation6], 16, %s1, [#allocation5]
    $region21: #{tpu_custom_call.1} parent=1 // pred_fallthru
      _
    // Predicated region
    $region22: #{tpu_custom_call.1} parent=1 // pred_check
      _
    $region23: #{tpu_custom_call.1} parent=1 // pred_check_branch
      %163 = sbr.rel (0) target = $region25
    $region24: #{tpu_custom_call.1} parent=1 // pred_region
      %164 = dma.done [#allocation5], 16
    $region25: #{tpu_custom_call.1} parent=1 // pred_fallthru
      _
    %165 = sfence
    %166 = vsyncpa [#allocation4], 1
    %167 = vsyncpa [#allocation5], 1

</llo_original>
